<compile_context>
chip_gen: v7x
topology: tpu7x:2x2x1
jax: 0.10.0
libtpu: 0.0.40
codegen_flags: <defaults>
</compile_context>

<pallas_src>
import functools

import jax
import jax.numpy as jnp
from jax.experimental import pallas as pl
from jax.experimental.pallas import tpu as pltpu


def _round_up(a, m):
    return ((a + m - 1) // m) * m


def _cdiv(a, b):
    return -(-a // b)


def _vmem_capacity_bytes():
    """Physical per-TensorCore VMEM; conservative fallback (v7x) if unknown."""
    try:
        return int(pltpu.get_tpu_info().vmem_capacity_bytes)
    except Exception:
        return 64 << 20


# ---------------------------------------------------------------------------
# Kernels
# ---------------------------------------------------------------------------
def _mlp_kernel_resident(x_ref, w_ref, b_ref, g_ref, be_ref, o_ref, *, ln_eps):
    """grid = (row_tiles,). Whole (K, N) weight resident in VMEM."""
    y = jnp.dot(x_ref[...], w_ref[...], preferred_element_type=jnp.float32)
    y = y + b_ref[...]                       # Linear bias (f32)
    y = jnp.maximum(y, 0.0)                  # ReLU
    mean = jnp.mean(y, axis=-1, keepdims=True)
    c = y - mean
    var = jnp.mean(c * c, axis=-1, keepdims=True)
    y = c * jax.lax.rsqrt(var + ln_eps)      # LayerNorm (biased var, f32)
    # Dropout: eval-mode identity.
    o_ref[...] = (y * g_ref[...] + be_ref[...]).astype(o_ref.dtype)


def _mlp_kernel_tiled_k(x_ref, w_ref, b_ref, g_ref, be_ref, o_ref, acc_ref, *,
                        ln_eps):
    """grid = (row_tiles, k_tiles). f32 accumulator over the K reduction."""
    k = pl.program_id(1)

    @pl.when(k == 0)
    def _():
        acc_ref[...] = jnp.zeros_like(acc_ref)

    acc_ref[...] += jnp.dot(x_ref[...], w_ref[...],
                            preferred_element_type=jnp.float32)

    @pl.when(k == pl.num_programs(1) - 1)
    def _():
        y = acc_ref[...] + b_ref[...]
        y = jnp.maximum(y, 0.0)
        mean = jnp.mean(y, axis=-1, keepdims=True)
        c = y - mean
        var = jnp.mean(c * c, axis=-1, keepdims=True)
        y = c * jax.lax.rsqrt(var + ln_eps)
        # Dropout: eval-mode identity.
        o_ref[...] = (y * g_ref[...] + be_ref[...]).astype(o_ref.dtype)


# ---------------------------------------------------------------------------
# Wrapper
# ---------------------------------------------------------------------------
def mlp_block(x, weight_t, bias, ln_weight, ln_bias, *, ln_eps=1e-5,
              out_dtype=None, exact_f32=False, _force_tiled_k=False):
    """Fused MLPBlock forward.

    x:        (B, K)
    weight_t: (K, N)  -- PyTorch stores (N, K); transpose ONCE at load time.
    bias, ln_weight, ln_bias: (N,)
    exact_f32: keep f32 MXU operands (default casts f32 inputs to bf16 for the
               matmul; accumulation and LayerNorm math are f32 either way).
    """
    B, K = x.shape
    Kw, N = weight_t.shape
    assert K == Kw, "weight_t must be (in_features, out_features)"
    out_dtype = out_dtype or x.dtype

    # --- MXU operand dtype ------------------------------------------------
    if x.dtype == jnp.float32 and not exact_f32:
        mm_dtype = jnp.bfloat16
    else:
        mm_dtype = x.dtype
    x_mm = x.astype(mm_dtype)
    w_mm = weight_t.astype(mm_dtype)
    mm_itemsize = jnp.dtype(mm_dtype).itemsize
    out_itemsize = jnp.dtype(out_dtype).itemsize

    # --- Pad K (contraction) to a lane-aligned multiple of 128 -------------
    # Zero rows/cols are matmul-neutral, so this is free and keeps K tileable.
    K_pad = _round_up(K, 128)
    if K_pad != K:
        x_mm = jnp.pad(x_mm, ((0, 0), (0, K_pad - K)))
        w_mm = jnp.pad(w_mm, ((0, K_pad - K), (0, 0)))

    # --- Generation-aware VMEM budget --------------------------------------
    vmem_cap = _vmem_capacity_bytes()            # 128 MiB v5e/v6e, 64 MiB v7x
    budget = int(vmem_cap * 0.75)                # ~96 MiB / ~48 MiB

    # --- Row tile ------------------------------------------------------------
    row_q = 16 if mm_itemsize < 4 else 8         # sublane packing of operands
    tm = min(256, _round_up(B, row_q))
    min_tm = max(row_q, min(128, _round_up(B, row_q)))
    # Give both TensorCores (grid axis is "parallel") work when batch allows.
    while tm > min_tm and _cdiv(B, tm) < 2:
        tm = max(min_tm, _round_up(tm // 2, row_q))

    param_bytes = 3 * 2 * 8 * _round_up(N, 128) * 4   # bias/gamma/beta tiles

    def resident_fp(tm_):
        return (2 * tm_ * K_pad * mm_itemsize     # x tile (double-buffered)
                + 2 * K_pad * N * mm_itemsize     # weight (conservative 2x)
                + 2 * tm_ * N * out_itemsize      # out tile (double-buffered)
                + param_bytes)

    def tiled_fp(tm_, tk_):
        return (2 * tm_ * tk_ * mm_itemsize
                + 2 * tk_ * N * mm_itemsize
                + 2 * tm_ * N * out_itemsize
                + tm_ * N * 4                     # f32 accumulator scratch
                + param_bytes)

    use_resident = (not _force_tiled_k) and resident_fp(tm) <= budget

    if use_resident:
        # ---- weight-resident path: one (K, N) HBM fetch total -------------
        B_pad = _round_up(B, tm)
        if B_pad != B:
            x_mm = jnp.pad(x_mm, ((0, B_pad - B), (0, 0)))
        grid = (B_pad // tm,)
        fp = resident_fp(tm)
        kernel = functools.partial(_mlp_kernel_resident, ln_eps=ln_eps)
        in_specs = [
            pl.BlockSpec((tm, K_pad), lambda i: (i, 0)),   # x row tile
            pl.BlockSpec((K_pad, N), lambda i: (0, 0)),    # weight: resident
            pl.BlockSpec((1, N), lambda i: (0, 0)),        # bias (f32)
            pl.BlockSpec((1, N), lambda i: (0, 0)),        # ln gamma (f32)
            pl.BlockSpec((1, N), lambda i: (0, 0)),        # ln beta (f32)
        ]
        out_spec = pl.BlockSpec((tm, N), lambda i: (i, 0))
        scratch = []
        dim_sem = ("parallel",)
        weight_fetches = 1
    else:
        # ---- K-tiled accumulator path --------------------------------------
        # Weight HBM traffic = ceil(B_pad/tm) * K * N regardless of tk, so
        # shrink tk first and keep tm as large as possible.
        tk = 128 if _force_tiled_k else _round_up(min(K_pad, 512), 128)
        while tk > 128 and tiled_fp(tm, tk) > budget:
            tk = max(128, (tk // 2 // 128) * 128)
        while tm > min_tm and tiled_fp(tm, tk) > budget:
            tm = max(min_tm, _round_up(tm // 2, row_q))

        k_tiles = _cdiv(K_pad, tk)
        K_full = k_tiles * tk
        if K_full != K_pad:                       # pad K up to a tk multiple
            x_mm = jnp.pad(x_mm, ((0, 0), (0, K_full - K_pad)))
            w_mm = jnp.pad(w_mm, ((0, K_full - K_pad), (0, 0)))
            K_pad = K_full

        B_pad = _round_up(B, tm)
        if B_pad != B:
            x_mm = jnp.pad(x_mm, ((0, B_pad - B), (0, 0)))
        grid = (B_pad // tm, k_tiles)
        fp = tiled_fp(tm, tk)
        kernel = functools.partial(_mlp_kernel_tiled_k, ln_eps=ln_eps)
        in_specs = [
            pl.BlockSpec((tm, tk), lambda i, k: (i, k)),   # x row/K tile
            pl.BlockSpec((tk, N), lambda i, k: (k, 0)),    # weight K tile
            pl.BlockSpec((1, N), lambda i, k: (0, 0)),
            pl.BlockSpec((1, N), lambda i, k: (0, 0)),
            pl.BlockSpec((1, N), lambda i, k: (0, 0)),
        ]
        out_spec = pl.BlockSpec((tm, N), lambda i, k: (i, 0))
        scratch = [pltpu.VMEM((tm, N), jnp.float32)]
        dim_sem = ("parallel", "arbitrary")
        weight_fetches = B_pad // tm

    # vmem_limit_bytes: footprint + headroom, capped below physical VMEM.
    vmem_limit = min(fp + (16 << 20), int(vmem_cap * 0.85))
    vmem_limit = int(min(max(vmem_limit, 32 << 20), int(vmem_cap * 0.9)))

    # Params pre-cast to f32 once in the wrapper (no per-tile epilogue casts).
    b2 = bias.astype(jnp.float32).reshape(1, N)
    g2 = ln_weight.astype(jnp.float32).reshape(1, N)
    be2 = ln_bias.astype(jnp.float32).reshape(1, N)

    cost = pl.CostEstimate(
        flops=2 * B_pad * K_pad * N,
        transcendentals=0,
        bytes_accessed=(B_pad * K_pad * mm_itemsize
                        + weight_fetches * K_pad * N * mm_itemsize
                        + B_pad * N * out_itemsize
                        + 3 * N * 4))

    out = pl.pallas_call(
        kernel,
        out_shape=jax.ShapeDtypeStruct((B_pad, N), out_dtype),
        grid_spec=pltpu.PrefetchScalarGridSpec(
            num_scalar_prefetch=0,
            grid=grid,
            in_specs=in_specs,
            out_specs=out_spec,
            scratch_shapes=scratch,
        ),
        compiler_params=pltpu.CompilerParams(
            dimension_semantics=dim_sem,
            vmem_limit_bytes=vmem_limit),
        cost_estimate=cost,
    )(x_mm, w_mm, b2, g2, be2)

    return out[:B] if B_pad != B else out


# ---------------------------------------------------------------------------
# Pure-JAX reference
# ---------------------------------------------------------------------------
def _reference(x, weight, bias, ln_weight, ln_bias, eps=1e-5, mm_dtype=None):
    xr = x.astype(mm_dtype) if mm_dtype is not None else x.astype(jnp.float32)
    wr = weight.astype(mm_dtype) if mm_dtype is not None else weight.astype(jnp.float32)
    y = jnp.dot(xr, wr.T, preferred_element_type=jnp.float32) + bias
    y = jnp.maximum(y, 0.0)
    mean = jnp.mean(y, axis=-1, keepdims=True)
    var = jnp.mean((y - mean) ** 2, axis=-1, keepdims=True)
    y = (y - mean) / jnp.sqrt(var + eps)
    return y * ln_weight + ln_bias


if __name__ == "__main__":
    key = jax.random.PRNGKey(0)
    B, in_features, out_features = 32, 64, 128

    k_x, k_w, k_b, k_g, k_be, k_x2, k_x3, k_w3 = jax.random.split(key, 8)
    x = jax.random.normal(k_x, (B, in_features), dtype=jnp.float32)
    bound = 1.0 / (in_features ** 0.5)
    weight = jax.random.uniform(k_w, (out_features, in_features),
                                minval=-bound, maxval=bound, dtype=jnp.float32)
    bias = jax.random.uniform(k_b, (out_features,),
                              minval=-bound, maxval=bound, dtype=jnp.float32)
    ln_weight = 1.0 + 0.05 * jax.random.normal(k_g, (out_features,), jnp.float32)
    ln_bias = 0.05 * jax.random.normal(k_be, (out_features,), jnp.float32)

    # One-time parameter-load transpose: PyTorch (N, K) -> kernel (K, N).
    weight_t = jnp.asarray(weight.T)

    ref_f32 = _reference(x, weight, bias, ln_weight, ln_bias)
    ref_bf16 = _reference(x, weight, bias, ln_weight, ln_bias,
                          mm_dtype=jnp.bfloat16)

    # 1) Default path: bf16 MXU operands, weight resident in VMEM.
    out = jax.block_until_ready(mlp_block(x, weight_t, bias, ln_weight, ln_bias))
    assert out.shape == (B, out_features)
    assert jnp.allclose(out, ref_bf16, atol=1e-3, rtol=1e-3), \
        float(jnp.max(jnp.abs(out - ref_bf16)))
    assert jnp.allclose(out, ref_f32, atol=5e-2, rtol=5e-2), \
        float(jnp.max(jnp.abs(out - ref_f32)))

    # 2) Exact-f32 operand path.
    out_exact = jax.block_until_ready(
        mlp_block(x, weight_t, bias, ln_weight, ln_bias, exact_f32=True))
    assert jnp.allclose(out_exact, ref_f32, atol=1e-4, rtol=1e-4), \
        float(jnp.max(jnp.abs(out_exact - ref_f32)))

    # 3) Uneven batch (exercises B padding + output slice).
    x2 = jax.random.normal(k_x2, (20, in_features), dtype=jnp.float32)
    out2 = jax.block_until_ready(
        mlp_block(x2, weight_t, bias, ln_weight, ln_bias, exact_f32=True))
    ref2 = _reference(x2, weight, bias, ln_weight, ln_bias)
    assert out2.shape == (20, out_features)
    assert jnp.allclose(out2, ref2, atol=1e-4, rtol=1e-4), \
        float(jnp.max(jnp.abs(out2 - ref2)))

    # 4) K-tiled accumulator fallback path with 2 K steps (K=256, tk=128).
    K3 = 256
    x3 = jax.random.normal(k_x3, (16, K3), dtype=jnp.float32)
    w3 = jax.random.uniform(k_w3, (out_features, K3),
                            minval=-1.0 / 16, maxval=1.0 / 16, dtype=jnp.float32)
    out3 = jax.block_until_ready(
        mlp_block(x3, jnp.asarray(w3.T), bias, ln_weight, ln_bias,
                  exact_f32=True, _force_tiled_k=True))
    ref3 = _reference(x3, w3, bias, ln_weight, ln_bias)
    assert jnp.allclose(out3, ref3, atol=1e-4, rtol=1e-4), \
        float(jnp.max(jnp.abs(out3 - ref3)))

    print("KERNEL_OK")
</pallas_src>

<mosaic_0001>
module attributes {stable_mosaic.version = 11 : i64} {
  func.func @_mlp_kernel_resident(%arg0: i32, %arg1: memref<32x128xbf16, #tpu.memory_space<vmem>>, %arg2: memref<128x128xbf16, #tpu.memory_space<vmem>>, %arg3: memref<1x128xf32, #tpu.memory_space<vmem>>, %arg4: memref<1x128xf32, #tpu.memory_space<vmem>>, %arg5: memref<1x128xf32, #tpu.memory_space<vmem>>, %arg6: memref<32x128xf32, #tpu.memory_space<vmem>>) attributes {dimension_semantics = [#tpu.dimension_semantics<parallel>], iteration_bounds = array<i64: 1>, scalar_prefetch = 0 : i64, scratch_operands = 0 : i64, tpu.core_type = #tpu.core_type<tc>, window_params = [{transform_indices = @transform_0, window_bounds = array<i64: 32, 128>}, {pipeline_mode = #tpu.pipeline_mode<synchronous>, transform_indices = @transform_1, window_bounds = array<i64: 128, 128>}, {pipeline_mode = #tpu.pipeline_mode<synchronous>, transform_indices = @transform_2, window_bounds = array<i64: 1, 128>}, {pipeline_mode = #tpu.pipeline_mode<synchronous>, transform_indices = @transform_3, window_bounds = array<i64: 1, 128>}, {pipeline_mode = #tpu.pipeline_mode<synchronous>, transform_indices = @transform_4, window_bounds = array<i64: 1, 128>}, {transform_indices = @transform_5, window_bounds = array<i64: 32, 128>}]} {
    %c0 = arith.constant 0 : index
    %c0_0 = arith.constant 0 : index
    %0 = vector.load %arg1[%c0, %c0_0] : memref<32x128xbf16, #tpu.memory_space<vmem>>, vector<32x128xbf16>
    %c0_1 = arith.constant 0 : index
    %c0_2 = arith.constant 0 : index
    %1 = vector.load %arg2[%c0_1, %c0_2] : memref<128x128xbf16, #tpu.memory_space<vmem>>, vector<128x128xbf16>
    %cst = arith.constant dense<0.000000e+00> : vector<32x128xf32>
    %2 = tpu.matmul %0, %1, %cst {dimension_numbers = #tpu.dot_dimension_numbers<[1], [0], [0], [1], [0, 0, 1, 1], [], []>} : vector<32x128xbf16>, vector<128x128xbf16>, vector<32x128xf32> -> vector<32x128xf32>
    %c0_3 = arith.constant 0 : index
    %c0_4 = arith.constant 0 : index
    %3 = vector.load %arg3[%c0_3, %c0_4] : memref<1x128xf32, #tpu.memory_space<vmem>>, vector<1x128xf32>
    %4 = vector.broadcast %3 : vector<1x128xf32> to vector<32x128xf32>
    %5 = arith.addf %2, %4 : vector<32x128xf32>
    %cst_5 = arith.constant 0.000000e+00 : f32
    %6 = vector.broadcast %cst_5 : f32 to vector<32x128xf32>
    %7 = arith.maximumf %5, %6 : vector<32x128xf32>
    %cst_6 = arith.constant dense<0.000000e+00> : vector<32xf32>
    %8 = vector.multi_reduction <add>, %7, %cst_6 [1] : vector<32x128xf32> to vector<32xf32>
    %9 = vector.shape_cast %8 : vector<32xf32> to vector<32x1xf32>
    %cst_7 = arith.constant 1.280000e+02 : f32
    %10 = vector.broadcast %cst_7 : f32 to vector<32x1xf32>
    %11 = arith.divf %9, %10 : vector<32x1xf32>
    %12 = vector.broadcast %11 : vector<32x1xf32> to vector<32x128xf32>
    %13 = arith.subf %7, %12 : vector<32x128xf32>
    %14 = arith.mulf %13, %13 : vector<32x128xf32>
    %cst_8 = arith.constant dense<0.000000e+00> : vector<32xf32>
    %15 = vector.multi_reduction <add>, %14, %cst_8 [1] : vector<32x128xf32> to vector<32xf32>
    %16 = vector.shape_cast %15 : vector<32xf32> to vector<32x1xf32>
    %cst_9 = arith.constant 1.280000e+02 : f32
    %17 = vector.broadcast %cst_9 : f32 to vector<32x1xf32>
    %18 = arith.divf %16, %17 : vector<32x1xf32>
    %cst_10 = arith.constant 9.99999974E-6 : f32
    %19 = vector.broadcast %cst_10 : f32 to vector<32x1xf32>
    %20 = arith.addf %18, %19 : vector<32x1xf32>
    %21 = math.rsqrt %20 : vector<32x1xf32>
    %22 = vector.broadcast %21 : vector<32x1xf32> to vector<32x128xf32>
    %23 = arith.mulf %13, %22 : vector<32x128xf32>
    %c0_11 = arith.constant 0 : index
    %c0_12 = arith.constant 0 : index
    %24 = vector.load %arg4[%c0_11, %c0_12] : memref<1x128xf32, #tpu.memory_space<vmem>>, vector<1x128xf32>
    %25 = vector.broadcast %24 : vector<1x128xf32> to vector<32x128xf32>
    %26 = arith.mulf %23, %25 : vector<32x128xf32>
    %c0_13 = arith.constant 0 : index
    %c0_14 = arith.constant 0 : index
    %27 = vector.load %arg5[%c0_13, %c0_14] : memref<1x128xf32, #tpu.memory_space<vmem>>, vector<1x128xf32>
    %28 = vector.broadcast %27 : vector<1x128xf32> to vector<32x128xf32>
    %29 = arith.addf %26, %28 : vector<32x128xf32>
    %c0_15 = arith.constant 0 : index
    %c0_16 = arith.constant 0 : index
    %30 = vector.load %arg6[%c0_15, %c0_16] : memref<32x128xf32, #tpu.memory_space<vmem>>, vector<32x128xf32>
    tpu.vector_store %arg6[%c0_15, %c0_16], %29 {strides = array<i32>} : memref<32x128xf32, #tpu.memory_space<vmem>>, vector<32x128xf32>,
    return
  }
  func.func @transform_0(%arg0: i32) -> (i32, i32) {
    %c0_i32 = arith.constant 0 : i32
    %c0_i32_0 = arith.constant 0 : i32
    return %arg0, %c0_i32 : i32, i32
  }
  func.func @transform_1(%arg0: i32) -> (i32, i32) {
    %c0_i32 = arith.constant 0 : i32
    %c0_i32_0 = arith.constant 0 : i32
    %c0_i32_1 = arith.constant 0 : i32
    return %c0_i32, %c0_i32_0 : i32, i32
  }
  func.func @transform_2(%arg0: i32) -> (i32, i32) {
    %c0_i32 = arith.constant 0 : i32
    %c0_i32_0 = arith.constant 0 : i32
    %c0_i32_1 = arith.constant 0 : i32
    return %c0_i32, %c0_i32_0 : i32, i32
  }
  func.func @transform_3(%arg0: i32) -> (i32, i32) {
    %c0_i32 = arith.constant 0 : i32
    %c0_i32_0 = arith.constant 0 : i32
    %c0_i32_1 = arith.constant 0 : i32
    return %c0_i32, %c0_i32_0 : i32, i32
  }
  func.func @transform_4(%arg0: i32) -> (i32, i32) {
    %c0_i32 = arith.constant 0 : i32
    %c0_i32_0 = arith.constant 0 : i32
    %c0_i32_1 = arith.constant 0 : i32
    return %c0_i32, %c0_i32_0 : i32, i32
  }
  func.func @transform_5(%arg0: i32) -> (i32, i32) {
    %c0_i32 = arith.constant 0 : i32
    %c0_i32_0 = arith.constant 0 : i32
    return %arg0, %c0_i32 : i32, i32
  }
}

</mosaic_0001>

<llo_original>
// kernel: tpu_custom_call.1
$region0: #{tpu_custom_call.1}
  #allocation0 [shape = 'u32[]', space=smem, size = 0x4, offset = 0x4, fixed_abs, tag = 'smem constant byte address 0x4 - core index']
  #allocation1 [shape = 'u32[144,128]{1,0:T(1,128)}', space=vmem, size = 0x12000, scoped, tag = 'internal scratch']
  %s0 = inlined_call_operand.hbm [shape: bf16[32,128], index: 0, kind: input, shape index: {}]
  %s1 = inlined_call_operand.hbm [shape: bf16[128,128], index: 1, kind: input, shape index: {}]
  %s2 = inlined_call_operand.vmem [shape: f32[1,128], index: 2, kind: input, shape index: {}]
  %s3 = inlined_call_operand.vmem [shape: f32[1,128], index: 3, kind: input, shape index: {}]
  %s4 = inlined_call_operand.vmem [shape: f32[1,128], index: 4, kind: input, shape index: {}]
  %s5 = inlined_call_operand.hbm [shape: f32[32,128], index: 5, kind: output, shape index: {}]
  %s6 = sld [smem:[#allocation0]]
  $region38: #{tpu_custom_call.1} parent=0
    _
  %s8 = ssub.s32 1, %s6
  %s9 = scalar_select 0, %s8, %s6
  $region1: #{tpu_custom_call.1} parent=0
    #allocation2 [shape = 'u8[8192]{0}', space=vmem, size = 0x2000, scoped, tag = 'input window, operand 0, single buffered']
    #allocation3 [shape = 's32[1]{0}', space=sflag, size = 0x4, scoped, tag = 'scoped memory for tpu_custom_call.1']
    #allocation4 [shape = 's32[1]{0}', space=sflag, size = 0x4, scoped, tag = 'scoped memory for tpu_custom_call.1']
    #allocation5 [shape = 'u8[32768]{0}', space=vmem, size = 0x8000, scoped, tag = 'input window, operand 1, single buffered']
    #allocation6 [shape = 's32[1]{0}', space=sflag, size = 0x4, scoped, tag = 'scoped memory for tpu_custom_call.1']
    #allocation7 [shape = 'u8[16384]{0}', space=vmem, size = 0x4000, scoped, tag = 'output window, operand 0, single buffered']
    %10 = vsyncpa [#allocation3], 0
    %11 = vsyncpa [#allocation6], 0
    %12 = vsyncpa [#allocation4], 0
    // Predicated region
    $region2: #{tpu_custom_call.1} parent=1 // pred_check
      _
    $region3: #{tpu_custom_call.1} parent=1 // pred_check_branch
      %14 = sbr.rel (0) target = $region5
    $region4: #{tpu_custom_call.1} parent=1 // pred_region
      %s16 = ssub.s32 256, 256
      %17 = vsyncadd [#allocation3], %s16
      %s18 = sshll.u32 [#allocation2], 4
      %s19 = int_to_ptr.vmem [resolvable:$true] %s18
      %24 = dma.hbm_to_vmem [thread:$0]  %s0, 256, %s19, [#allocation3], 64, 64, 4
    $region5: #{tpu_custom_call.1} parent=1 // pred_fallthru
      _
    // Predicated region
    $region6: #{tpu_custom_call.1} parent=1 // pred_check
      _
    $region7: #{tpu_custom_call.1} parent=1 // pred_check_branch
      %26 = sbr.rel (0) target = $region9
    $region8: #{tpu_custom_call.1} parent=1 // pred_region
      %s28 = ssub.s32 1024, 1024
      %29 = vsyncadd [#allocation6], %s28
      %s30 = sshll.u32 [#allocation5], 4
      %s31 = int_to_ptr.vmem [resolvable:$true] %s30
      %36 = dma.hbm_to_vmem [thread:$0]  %s1, 1024, %s31, [#allocation6], 64, 64, 4
    $region9: #{tpu_custom_call.1} parent=1 // pred_fallthru
      _
    // Predicated region
    $region10: #{tpu_custom_call.1} parent=1 // pred_check
      _
    $region11: #{tpu_custom_call.1} parent=1 // pred_check_branch
      %38 = sbr.rel (0) target = $region13
    $region12: #{tpu_custom_call.1} parent=1 // pred_region
      _
    $region13: #{tpu_custom_call.1} parent=1 // pred_fallthru
      _
    // Predicated region
    $region14: #{tpu_custom_call.1} parent=1 // pred_check
      _
    $region15: #{tpu_custom_call.1} parent=1 // pred_check_branch
      %40 = sbr.rel (0) target = $region17
    $region16: #{tpu_custom_call.1} parent=1 // pred_region
      _
    $region17: #{tpu_custom_call.1} parent=1 // pred_fallthru
      _
    // Predicated region
    $region18: #{tpu_custom_call.1} parent=1 // pred_check
      _
    $region19: #{tpu_custom_call.1} parent=1 // pred_check_branch
      %42 = sbr.rel (0) target = $region21
    $region20: #{tpu_custom_call.1} parent=1 // pred_region
      _
    $region21: #{tpu_custom_call.1} parent=1 // pred_fallthru
      _
    // Predicated region
    $region22: #{tpu_custom_call.1} parent=1 // pred_check
      _
    $region23: #{tpu_custom_call.1} parent=1 // pred_check_branch
      %44 = sbr.rel (0) target = $region25
    $region24: #{tpu_custom_call.1} parent=1 // pred_region
      %45 = dma.done [#allocation3], 256
    $region25: #{tpu_custom_call.1} parent=1 // pred_fallthru
      _
    // Predicated region
    $region26: #{tpu_custom_call.1} parent=1 // pred_check
      _
    $region27: #{tpu_custom_call.1} parent=1 // pred_check_branch
      %47 = sbr.rel (0) target = $region29
    $region28: #{tpu_custom_call.1} parent=1 // pred_region
      %48 = dma.done [#allocation6], 1024
    $region29: #{tpu_custom_call.1} parent=1 // pred_fallthru
      _
    %v50 = vld [vmem:[#allocation2] sm:$0xf]
    %v51 = vld [vmem:[#allocation2 + $0x4] sm:$0xf]
    %v52 = vld [vmem:[#allocation2 + $0x8] sm:$0xf]
    %v53 = vld [vmem:[#allocation2 + $0xc] sm:$0xf]
    %v54 = vld [vmem:[#allocation5] sm:$0xf]
    %v55 = vld [vmem:[#allocation5 + $0x4] sm:$0xf]
    %v56 = vld [vmem:[#allocation5 + $0x8] sm:$0xf]
    %v57 = vld [vmem:[#allocation5 + $0xc] sm:$0xf]
    %v58 = vld [vmem:[#allocation5 + $0x10] sm:$0xf]
    %v59 = vld [vmem:[#allocation5 + $0x14] sm:$0xf]
    %v60 = vld [vmem:[#allocation5 + $0x18] sm:$0xf]
    %v61 = vld [vmem:[#allocation5 + $0x1c] sm:$0xf]
    %v62 = vld [vmem:[#allocation5 + $0x20] sm:$0xf]
    %v63 = vld [vmem:[#allocation5 + $0x24] sm:$0xf]
    %v64 = vld [vmem:[#allocation5 + $0x28] sm:$0xf]
    %v65 = vld [vmem:[#allocation5 + $0x2c] sm:$0xf]
    %v66 = vld [vmem:[#allocation5 + $0x30] sm:$0xf]
    %v67 = vld [vmem:[#allocation5 + $0x34] sm:$0xf]
    %v68 = vld [vmem:[#allocation5 + $0x38] sm:$0xf]
    %v69 = vld [vmem:[#allocation5 + $0x3c] sm:$0xf]
    %v70 = vld [vmem:[%s2] sm:$0x1]
    %v72 = vlaneseq
    %v73 = vshrl.u32 %v72, 7
    %v74 = vsub.s32 0, %v73
    %v75 = vrot.slane %v70, %v74
    %v81 = vunpack.c.l.b16 %v50
    %v82 = vunpack.c.l.b16 %v51
    %v83 = vunpack.c.l.b16 %v52
    %v84 = vunpack.c.l.b16 %v53
    %v85 = vpack.c.b16 %v82, %v81
    %v86 = vpack.c.b16 %v84, %v83
    %v105 = vunpack.c.l.b16 %v54
    %v106 = vunpack.c.l.b16 %v55
    %v107 = vunpack.c.l.b16 %v56
    %v108 = vunpack.c.l.b16 %v57
    %v109 = vunpack.c.l.b16 %v58
    %v110 = vunpack.c.l.b16 %v59
    %v111 = vunpack.c.l.b16 %v60
    %v112 = vunpack.c.l.b16 %v61
    %v113 = vunpack.c.l.b16 %v62
    %v114 = vunpack.c.l.b16 %v63
    %v115 = vunpack.c.l.b16 %v64
    %v116 = vunpack.c.l.b16 %v65
    %v117 = vunpack.c.l.b16 %v66
    %v118 = vunpack.c.l.b16 %v67
    %v119 = vunpack.c.l.b16 %v68
    %v120 = vunpack.c.l.b16 %v69
    %v121 = vpack.c.b16 %v106, %v105
    %v122 = vpack.c.b16 %v108, %v107
    %v123 = vpack.c.b16 %v110, %v109
    %v124 = vpack.c.b16 %v112, %v111
    %v125 = vpack.c.b16 %v114, %v113
    %v126 = vpack.c.b16 %v116, %v115
    %v127 = vpack.c.b16 %v118, %v117
    %v128 = vpack.c.b16 %v120, %v119
    %137 = vmatprep.subr.bf16.mxu0 0
    %138 = vmatpush1.bf16.msra.mxu0 %v121
    %139 = vmatprep.subr.bf16.mxu0 0
    %140 = vmatpush1.bf16.msra.mxu0 %v122
    %141 = vmatprep.subr.bf16.mxu0 0
    %142 = vmatpush1.bf16.msra.mxu0 %v123
    %143 = vmatprep.subr.bf16.mxu0 0
    %144 = vmatpush1.bf16.msra.mxu0 %v124
    %145 = vmatprep.subr.bf16.mxu0 0
    %146 = vmatpush1.bf16.msra.mxu0 %v125
    %147 = vmatprep.subr.bf16.mxu0 0
    %148 = vmatpush1.bf16.msra.mxu0 %v126
    %149 = vmatprep.subr.bf16.mxu0 0
    %150 = vmatpush1.bf16.msra.mxu0 %v127
    %151 = vmatprep.subr.bf16.mxu0 0
    %152 = vmatpush1.bf16.msra.mxu0 %v128
    %153 = vmatprep.subr.bf16.mxu0 0
    %154 = vmatpush1.bf16.msra.mxu0 0
    %155 = vmatprep.subr.bf16.mxu0 0
    %156 = vmatpush1.bf16.msra.mxu0 0
    %157 = vmatprep.subr.bf16.mxu0 0
    %158 = vmatpush1.bf16.msra.mxu0 0
    %159 = vmatprep.subr.bf16.mxu0 0
    %160 = vmatpush1.bf16.msra.mxu0 0
    %161 = vmatprep.subr.bf16.mxu0 0
    %162 = vmatpush1.bf16.msra.mxu0 0
    %163 = vmatprep.subr.bf16.mxu0 0
    %164 = vmatpush1.bf16.msra.mxu0 0
    %165 = vmatprep.subr.bf16.mxu0 0
    %166 = vmatpush1.bf16.msra.mxu0 0
    %167 = vmatprep.subr.bf16.mxu0 0
    %168 = vmatpush1.bf16.msra.mxu0 0
    %169 = vmatprep.mubr.bf16.mxu0 0
    %170 = vmatmul.mubr.bf16.gmra.mrb[0].mxu0 %v85
    %v171 = vpop.f32.mrb[0].mxu0
    %v172 = vadd.f32 %v75, %v171
    %v173 = vpop.f32.mrb[0].mxu0
    %v174 = vpop.f32.mrb[0].mxu0
    %v175 = vadd.f32 %v75, %v174
    %v176 = vpop.f32.mrb[0].mxu0
    %177 = vmatprep.mubr.bf16.mxu0 0
    %178 = vmatmul.mubr.bf16.gmra.mrb[0].mxu0 %v86
    %v179 = vpop.f32.mrb[0].mxu0
    %v180 = vadd.f32 %v75, %v179
    %v181 = vpop.f32.mrb[0].mxu0
    %v182 = vpop.f32.mrb[0].mxu0
    %v183 = vadd.f32 %v75, %v182
    %v184 = vpop.f32.mrb[0].mxu0
    %185 = vdwg.mxu0
    %v186 = vmax.f32 %v172, 0.0
    %v187 = vmax.f32 %v175, 0.0
    %v188 = vmax.f32 %v180, 0.0
    %v189 = vmax.f32 %v183, 0.0
    %190 = vadd.xlane.f32.xlu0 %v186
    %v191 = vpop.xlane.xlu0 %190
    %192 = vadd.xlane.f32.xlu0 %v187
    %v193 = vpop.xlane.xlu0 %192
    %194 = vadd.xlane.f32.xlu0 %v188
    %v195 = vpop.xlane.xlu0 %194
    %196 = vadd.xlane.f32.xlu0 %v189
    %v197 = vpop.xlane.xlu0 %196
    %v198 = vrcp.pop 128.0
    %v199 = vmul.f32 %v191, %v198
    %v200 = vmul.f32 %v193, %v198
    %v201 = vmul.f32 %v195, %v198
    %v202 = vmul.f32 %v197, %v198
    %v203 = vsub.f32 %v186, %v199
    %v204 = vsub.f32 %v187, %v200
    %v205 = vsub.f32 %v188, %v201
    %v206 = vsub.f32 %v189, %v202
    %v207 = vmul.f32 %v203, %v203
    %v208 = vmul.f32 %v204, %v204
    %v209 = vmul.f32 %v205, %v205
    %v210 = vmul.f32 %v206, %v206
    %211 = vadd.xlane.f32.xlu0 %v207
    %v212 = vpop.xlane.xlu0 %211
    %213 = vadd.xlane.f32.xlu0 %v208
    %v214 = vpop.xlane.xlu0 %213
    %215 = vadd.xlane.f32.xlu0 %v209
    %v216 = vpop.xlane.xlu0 %215
    %217 = vadd.xlane.f32.xlu0 %v210
    %v218 = vpop.xlane.xlu0 %217
    %v219 = vmul.f32 %v212, %v198
    %v220 = vmul.f32 %v214, %v198
    %v221 = vmul.f32 %v216, %v198
    %v222 = vmul.f32 %v218, %v198
    %v223 = vadd.f32 %v219, 1e-05
    %v224 = vadd.f32 %v220, 1e-05
    %v225 = vadd.f32 %v221, 1e-05
    %v226 = vadd.f32 %v222, 1e-05
    %v227 = vrsqrt.pop %v223
    %v228 = vrsqrt.pop %v224
    %v229 = vrsqrt.pop %v225
    %v230 = vrsqrt.pop %v226
    %v231 = vmul.f32 %v203, %v227
    %v232 = vmul.f32 %v204, %v228
    %v233 = vmul.f32 %v205, %v229
    %v234 = vmul.f32 %v206, %v230
    %v235 = vld [vmem:[%s3] sm:$0x1]
    %v237 = vlaneseq
    %v238 = vshrl.u32 %v237, 7
    %v239 = vsub.s32 0, %v238
    %v240 = vrot.slane %v235, %v239
    %v242 = vmul.f32 %v231, %v240
    %v243 = vmul.f32 %v232, %v240
    %v244 = vmul.f32 %v233, %v240
    %v245 = vmul.f32 %v234, %v240
    %v246 = vld [vmem:[%s4] sm:$0x1]
    %v248 = vlaneseq
    %v249 = vshrl.u32 %v248, 7
    %v250 = vsub.s32 0, %v249
    %v251 = vrot.slane %v246, %v250
    %v253 = vadd.f32 %v242, %v251
    %v254 = vadd.f32 %v243, %v251
    %v255 = vadd.f32 %v244, %v251
    %v256 = vadd.f32 %v245, %v251
    %257 = vst [vmem:[#allocation7] sm:$0xff] %v253
    %258 = vst [vmem:[#allocation7 + $0x8] sm:$0xff] %v254
    %259 = vst [vmem:[#allocation7 + $0x10] sm:$0xff] %v255
    %260 = vst [vmem:[#allocation7 + $0x18] sm:$0xff] %v256
    // Predicated region
    $region30: #{tpu_custom_call.1} parent=1 // pred_check
      _
    $region31: #{tpu_custom_call.1} parent=1 // pred_check_branch
      %262 = sbr.rel (0) target = $region33
    $region32: #{tpu_custom_call.1} parent=1 // pred_region
      %s264 = ssub.s32 512, 512
      %265 = vsyncadd [#allocation4], %s264
      %s266 = sshll.u32 [#allocation7], 4
      %s267 = int_to_ptr.vmem [resolvable:$true] %s266
      %272 = dma.vmem_to_hbm [thread:$0]  %s267, 512, %s5, [#allocation4], 128, 128, 8
    $region33: #{tpu_custom_call.1} parent=1 // pred_fallthru
      _
    // Predicated region
    $region34: #{tpu_custom_call.1} parent=1 // pred_check
      _
    $region35: #{tpu_custom_call.1} parent=1 // pred_check_branch
      %274 = sbr.rel (0) target = $region37
    $region36: #{tpu_custom_call.1} parent=1 // pred_region
      %275 = dma.done [#allocation4], 512
    $region37: #{tpu_custom_call.1} parent=1 // pred_fallthru
      _
    %276 = vsyncpa [#allocation3], 1
    %277 = vsyncpa [#allocation6], 1
    %278 = vsyncpa [#allocation4], 1

</llo_original>
